<compile_context>
chip_gen: v6e
topology: v6e:2x2x1
jax: 0.10.0
libtpu: 0.0.40
codegen_flags: <defaults>
</compile_context>

<pallas_src>
import jax
import jax.numpy as jnp
from jax.experimental import pallas as pl
from jax.experimental.pallas import tpu as pltpu


def _round_up(n, m):
    return ((n + m - 1) // m) * m


def _cdiv(a, b):
    return (a + b - 1) // b


def _min_grid_steps():
    # v7x has 2 TensorCores per chip: force >=2 batch tiles so the "parallel"
    # grid axis can be sharded across both cores. v5e/v6e have 1 TC -> 1 is fine.
    try:
        kind = jax.devices()[0].device_kind.lower()
        if "v7" in kind:
            return 2
    except Exception:
        pass
    return 1


def _choose_batch_tile(B, batch_tile, min_grid_steps):
    if B <= batch_tile and min_grid_steps <= 1:
        # Single grid step: whole batch in one shot, sublane-aligned.
        tb = _round_up(B, 16)
    else:
        n_steps = max(min_grid_steps, _cdiv(B, batch_tile))
        tb = _round_up(_cdiv(B, n_steps), 8)
        # Prefer a 16-row multiple (dense bf16 sublane packing on the output
        # store) as long as it does not collapse below min_grid_steps steps.
        tb16 = _round_up(tb, 16)
        if _cdiv(B, tb16) >= min_grid_steps:
            tb = tb16
    b_pad = _round_up(B, tb)
    return tb, b_pad


def encoder_kernel(x_ref, w1_ref, b1_ref, w2_ref, b2_ref, wh_ref, bh_ref, out_ref):
    compute_dtype = w1_ref.dtype

    # Cast the f32 activation tile to the MXU compute dtype in-register (no
    # extra HBM pass in the wrapper).
    x = x_ref[...].astype(compute_dtype)                                 # (TB, K)

    # linear1 + relu1 (f32 accumulate, f32 bias/ReLU)
    h1 = jnp.dot(x, w1_ref[...], preferred_element_type=jnp.float32)
    h1 = jnp.maximum(h1 + b1_ref[...], 0.0)                              # (TB, 256)

    # linear2 + relu2
    h2 = jnp.dot(h1.astype(compute_dtype), w2_ref[...],
                 preferred_element_type=jnp.float32)
    h2 = jnp.maximum(h2 + b2_ref[...], 0.0)                              # (TB, 128)

    # fused mu|logvar head (zero-padded to a lane-dense 128-multiple width)
    out = jnp.dot(h2.astype(compute_dtype), wh_ref[...],
                  preferred_element_type=jnp.float32) + bh_ref[...]      # (TB, Np)

    out_ref[...] = out.astype(out_ref.dtype)


def prepare_params(params, compute_dtype=jnp.bfloat16):
    """One-time weight preprocessing (run once, outside the forward hot path)."""
    w1, b1, w2, b2, wmu, bmu, wlv, blv = params
    latent_dim = wmu.shape[1]

    # Fuse mu/logvar heads into one matmul; pad N to a 128-lane multiple so the
    # output store is unmasked / lane-dense.
    wh = jnp.concatenate([wmu, wlv], axis=1)                 # (128, 2L)
    bh = jnp.concatenate([bmu, blv], axis=0)                 # (2L,)
    head_n = _round_up(max(2 * latent_dim, 128), 128)
    if head_n > 2 * latent_dim:
        wh = jnp.pad(wh, ((0, 0), (0, head_n - 2 * latent_dim)))
        bh = jnp.pad(bh, (0, head_n - 2 * latent_dim))

    w1c = w1.astype(compute_dtype)
    w2c = w2.astype(compute_dtype)
    whc = wh.astype(compute_dtype)
    b1r = b1.reshape(1, -1).astype(jnp.float32)
    b2r = b2.reshape(1, -1).astype(jnp.float32)
    bhr = bh.reshape(1, -1).astype(jnp.float32)
    return (w1c, b1r, w2c, b2r, whc, bhr)


def encoder_forward(x, prepared, latent_dim, *, batch_tile=512):
    """x: (B, input_dim) float32. Returns (mu, logvar), each (B, latent_dim) f32."""
    B, input_dim = x.shape
    w1c, b1r, w2c, b2r, whc, bhr = prepared
    head_n = whc.shape[1]
    compute_dtype = w1c.dtype
    # bf16 compute -> bf16 output stream (halves the largest HBM write); the
    # wrapper upcasts the sliced mu/logvar back to f32.
    out_dtype = jnp.float32 if compute_dtype == jnp.float32 else jnp.bfloat16

    tb, b_pad = _choose_batch_tile(B, batch_tile, _min_grid_steps())
    if b_pad > B:
        x = jnp.pad(x, ((0, b_pad - B), (0, 0)))

    grid = (b_pad // tb,)

    # x keeps its full (untiled) K dimension -> legal even when input_dim is not
    # a multiple of 128 (block == full array along that axis).
    x_spec = pl.BlockSpec((tb, input_dim), lambda i: (i, 0))
    w1_spec = pl.BlockSpec(w1c.shape, lambda i: (0, 0))
    b1_spec = pl.BlockSpec(b1r.shape, lambda i: (0, 0))
    w2_spec = pl.BlockSpec(w2c.shape, lambda i: (0, 0))
    b2_spec = pl.BlockSpec(b2r.shape, lambda i: (0, 0))
    wh_spec = pl.BlockSpec(whc.shape, lambda i: (0, 0))
    bh_spec = pl.BlockSpec(bhr.shape, lambda i: (0, 0))
    out_spec = pl.BlockSpec((tb, head_n), lambda i: (i, 0))

    h1_n, h2_n = w1c.shape[1], w2c.shape[1]
    flops = 2 * b_pad * (input_dim * h1_n + h1_n * h2_n + h2_n * head_n)
    bytes_accessed = (
        x.size * x.dtype.itemsize
        + sum(a.size * a.dtype.itemsize for a in prepared)
        + b_pad * head_n * jnp.dtype(out_dtype).itemsize
    )
    cost = pl.CostEstimate(flops=flops, transcendentals=0,
                           bytes_accessed=bytes_accessed)

    # Working set at tb<=1024 is a few MiB -> default scoped VMEM is fine
    # everywhere (incl. v5e's 16 MiB default). Only raise it for huge tiles.
    vmem_limit = 64 * 1024 * 1024 if tb > 1024 else None

    out = pl.pallas_call(
        encoder_kernel,
        out_shape=jax.ShapeDtypeStruct((b_pad, head_n), out_dtype),
        grid_spec=pltpu.PrefetchScalarGridSpec(
            num_scalar_prefetch=0,
            grid=grid,
            in_specs=[x_spec, w1_spec, b1_spec, w2_spec, b2_spec, wh_spec, bh_spec],
            out_specs=out_spec,
        ),
        compiler_params=pltpu.CompilerParams(
            dimension_semantics=("parallel",),
            vmem_limit_bytes=vmem_limit,
        ),
        cost_estimate=cost,
    )(x, w1c, b1r, w2c, b2r, whc, bhr)

    mu = out[:B, :latent_dim].astype(jnp.float32)
    logvar = out[:B, latent_dim:2 * latent_dim].astype(jnp.float32)
    return mu, logvar


def init_params(key, input_dim, latent_dim):
    """Deterministic synthetic parameters (shapes match the nn.Linear layers)."""
    ks = jax.random.split(key, 8)

    def linear(kw, kb, fan_in, fan_out):
        bound = 1.0 / jnp.sqrt(fan_in)
        w = jax.random.uniform(kw, (fan_in, fan_out), jnp.float32, -bound, bound)
        b = jax.random.uniform(kb, (fan_out,), jnp.float32, -bound, bound)
        return w, b

    w1, b1 = linear(ks[0], ks[1], input_dim, 256)
    w2, b2 = linear(ks[2], ks[3], 256, 128)
    wmu, bmu = linear(ks[4], ks[5], 128, latent_dim)
    wlv, blv = linear(ks[6], ks[7], 128, latent_dim)
    return (w1, b1, w2, b2, wmu, bmu, wlv, blv)


def encoder_reference(x, params):
    """Plain-JAX f32 reference for the correctness check."""
    w1, b1, w2, b2, wmu, bmu, wlv, blv = params
    h1 = jnp.maximum(x @ w1 + b1, 0.0)
    h2 = jnp.maximum(h1 @ w2 + b2, 0.0)
    return h2 @ wmu + bmu, h2 @ wlv + blv


if __name__ == "__main__":
    # TODO(synk): the PyTorch module's logger.debug calls have no kernel equivalent.
    key = jax.random.PRNGKey(0)
    kx, kp = jax.random.split(key)

    B, input_dim, latent_dim = 16, 64, 32
    x = jax.random.normal(kx, (B, input_dim), jnp.float32)
    params = init_params(kp, input_dim, latent_dim)

    mu_ref, logvar_ref = encoder_reference(x, params)

    fwd = jax.jit(encoder_forward, static_argnums=(2,))

    # f32 compute path (tolerance covers XLA-vs-Mosaic default matmul precision).
    prep_f32 = prepare_params(params, compute_dtype=jnp.float32)
    mu32, lv32 = fwd(x, prep_f32, latent_dim)
    jax.block_until_ready((mu32, lv32))
    assert mu32.shape == (B, latent_dim) and lv32.shape == (B, latent_dim)
    assert jnp.allclose(mu32, mu_ref, atol=2e-2, rtol=2e-2)
    assert jnp.allclose(lv32, logvar_ref, atol=2e-2, rtol=2e-2)

    # bf16 compute path (default; MXU operands + bf16 output stream).
    prep_bf16 = prepare_params(params, compute_dtype=jnp.bfloat16)
    mu, logvar = fwd(x, prep_bf16, latent_dim)
    jax.block_until_ready((mu, logvar))
    assert mu.shape == (B, latent_dim) and logvar.shape == (B, latent_dim)
    assert jnp.allclose(mu, mu_ref, atol=5e-2, rtol=5e-2)
    assert jnp.allclose(logvar, logvar_ref, atol=5e-2, rtol=5e-2)

    # Non-multiple-of-16 batch: exercises batch padding (and the 2-tile split on v7x).
    B2 = 40
    x2 = jax.random.normal(kx, (B2, input_dim), jnp.float32)
    mu2_ref, lv2_ref = encoder_reference(x2, params)
    mu2, lv2 = fwd(x2, prep_bf16, latent_dim)
    jax.block_until_ready((mu2, lv2))
    assert mu2.shape == (B2, latent_dim) and lv2.shape == (B2, latent_dim)
    assert jnp.allclose(mu2, mu2_ref, atol=5e-2, rtol=5e-2)
    assert jnp.allclose(lv2, lv2_ref, atol=5e-2, rtol=5e-2)

    print("KERNEL_OK")
</pallas_src>

<mosaic_0001>
module attributes {stable_mosaic.version = 11 : i64} {
  func.func @encoder_kernel(%arg0: i32, %arg1: memref<16x64xf32, #tpu.memory_space<vmem>>, %arg2: memref<64x256xf32, #tpu.memory_space<vmem>>, %arg3: memref<1x256xf32, #tpu.memory_space<vmem>>, %arg4: memref<256x128xf32, #tpu.memory_space<vmem>>, %arg5: memref<1x128xf32, #tpu.memory_space<vmem>>, %arg6: memref<128x128xf32, #tpu.memory_space<vmem>>, %arg7: memref<1x128xf32, #tpu.memory_space<vmem>>, %arg8: memref<16x128xf32, #tpu.memory_space<vmem>>) attributes {dimension_semantics = [#tpu.dimension_semantics<parallel>], iteration_bounds = array<i64: 1>, scalar_prefetch = 0 : i64, scratch_operands = 0 : i64, tpu.core_type = #tpu.core_type<tc>, window_params = [{transform_indices = @transform_0, window_bounds = array<i64: 16, 64>}, {pipeline_mode = #tpu.pipeline_mode<synchronous>, transform_indices = @transform_1, window_bounds = array<i64: 64, 256>}, {pipeline_mode = #tpu.pipeline_mode<synchronous>, transform_indices = @transform_2, window_bounds = array<i64: 1, 256>}, {pipeline_mode = #tpu.pipeline_mode<synchronous>, transform_indices = @transform_3, window_bounds = array<i64: 256, 128>}, {pipeline_mode = #tpu.pipeline_mode<synchronous>, transform_indices = @transform_4, window_bounds = array<i64: 1, 128>}, {pipeline_mode = #tpu.pipeline_mode<synchronous>, transform_indices = @transform_5, window_bounds = array<i64: 128, 128>}, {pipeline_mode = #tpu.pipeline_mode<synchronous>, transform_indices = @transform_6, window_bounds = array<i64: 1, 128>}, {transform_indices = @transform_7, window_bounds = array<i64: 16, 128>}]} {
    %c0 = arith.constant 0 : index
    %c0_0 = arith.constant 0 : index
    %0 = vector.load %arg1[%c0, %c0_0] : memref<16x64xf32, #tpu.memory_space<vmem>>, vector<16x64xf32>
    %c0_1 = arith.constant 0 : index
    %c0_2 = arith.constant 0 : index
    %1 = vector.load %arg2[%c0_1, %c0_2] : memref<64x256xf32, #tpu.memory_space<vmem>>, vector<64x256xf32>
    %cst = arith.constant dense<0.000000e+00> : vector<16x256xf32>
    %2 = tpu.matmul %0, %1, %cst {dimension_numbers = #tpu.dot_dimension_numbers<[1], [0], [0], [1], [0, 0, 1, 1], [], []>} : vector<16x64xf32>, vector<64x256xf32>, vector<16x256xf32> -> vector<16x256xf32>
    %c0_3 = arith.constant 0 : index
    %c0_4 = arith.constant 0 : index
    %3 = vector.load %arg3[%c0_3, %c0_4] : memref<1x256xf32, #tpu.memory_space<vmem>>, vector<1x256xf32>
    %4 = vector.broadcast %3 : vector<1x256xf32> to vector<16x256xf32>
    %5 = arith.addf %2, %4 : vector<16x256xf32>
    %cst_5 = arith.constant 0.000000e+00 : f32
    %6 = vector.broadcast %cst_5 : f32 to vector<16x256xf32>
    %7 = arith.maximumf %5, %6 : vector<16x256xf32>
    %c0_6 = arith.constant 0 : index
    %c0_7 = arith.constant 0 : index
    %8 = vector.load %arg4[%c0_6, %c0_7] : memref<256x128xf32, #tpu.memory_space<vmem>>, vector<256x128xf32>
    %cst_8 = arith.constant dense<0.000000e+00> : vector<16x128xf32>
    %9 = tpu.matmul %7, %8, %cst_8 {dimension_numbers = #tpu.dot_dimension_numbers<[1], [0], [0], [1], [0, 0, 1, 1], [], []>} : vector<16x256xf32>, vector<256x128xf32>, vector<16x128xf32> -> vector<16x128xf32>
    %c0_9 = arith.constant 0 : index
    %c0_10 = arith.constant 0 : index
    %10 = vector.load %arg5[%c0_9, %c0_10] : memref<1x128xf32, #tpu.memory_space<vmem>>, vector<1x128xf32>
    %11 = vector.broadcast %10 : vector<1x128xf32> to vector<16x128xf32>
    %12 = arith.addf %9, %11 : vector<16x128xf32>
    %cst_11 = arith.constant 0.000000e+00 : f32
    %13 = vector.broadcast %cst_11 : f32 to vector<16x128xf32>
    %14 = arith.maximumf %12, %13 : vector<16x128xf32>
    %c0_12 = arith.constant 0 : index
    %c0_13 = arith.constant 0 : index
    %15 = vector.load %arg6[%c0_12, %c0_13] : memref<128x128xf32, #tpu.memory_space<vmem>>, vector<128x128xf32>
    %cst_14 = arith.constant dense<0.000000e+00> : vector<16x128xf32>
    %16 = tpu.matmul %14, %15, %cst_14 {dimension_numbers = #tpu.dot_dimension_numbers<[1], [0], [0], [1], [0, 0, 1, 1], [], []>} : vector<16x128xf32>, vector<128x128xf32>, vector<16x128xf32> -> vector<16x128xf32>
    %c0_15 = arith.constant 0 : index
    %c0_16 = arith.constant 0 : index
    %17 = vector.load %arg7[%c0_15, %c0_16] : memref<1x128xf32, #tpu.memory_space<vmem>>, vector<1x128xf32>
    %18 = vector.broadcast %17 : vector<1x128xf32> to vector<16x128xf32>
    %19 = arith.addf %16, %18 : vector<16x128xf32>
    %c0_17 = arith.constant 0 : index
    %c0_18 = arith.constant 0 : index
    %20 = vector.load %arg8[%c0_17, %c0_18] : memref<16x128xf32, #tpu.memory_space<vmem>>, vector<16x128xf32>
    tpu.vector_store %arg8[%c0_17, %c0_18], %19 {strides = array<i32>} : memref<16x128xf32, #tpu.memory_space<vmem>>, vector<16x128xf32>,
    return
  }
  func.func @transform_0(%arg0: i32) -> (i32, i32) {
    %c0_i32 = arith.constant 0 : i32
    %c0_i32_0 = arith.constant 0 : i32
    return %arg0, %c0_i32 : i32, i32
  }
  func.func @transform_1(%arg0: i32) -> (i32, i32) {
    %c0_i32 = arith.constant 0 : i32
    %c0_i32_0 = arith.constant 0 : i32
    %c0_i32_1 = arith.constant 0 : i32
    return %c0_i32, %c0_i32_0 : i32, i32
  }
  func.func @transform_2(%arg0: i32) -> (i32, i32) {
    %c0_i32 = arith.constant 0 : i32
    %c0_i32_0 = arith.constant 0 : i32
    %c0_i32_1 = arith.constant 0 : i32
    return %c0_i32, %c0_i32_0 : i32, i32
  }
  func.func @transform_3(%arg0: i32) -> (i32, i32) {
    %c0_i32 = arith.constant 0 : i32
    %c0_i32_0 = arith.constant 0 : i32
    %c0_i32_1 = arith.constant 0 : i32
    return %c0_i32, %c0_i32_0 : i32, i32
  }
  func.func @transform_4(%arg0: i32) -> (i32, i32) {
    %c0_i32 = arith.constant 0 : i32
    %c0_i32_0 = arith.constant 0 : i32
    %c0_i32_1 = arith.constant 0 : i32
    return %c0_i32, %c0_i32_0 : i32, i32
  }
  func.func @transform_5(%arg0: i32) -> (i32, i32) {
    %c0_i32 = arith.constant 0 : i32
    %c0_i32_0 = arith.constant 0 : i32
    %c0_i32_1 = arith.constant 0 : i32
    return %c0_i32, %c0_i32_0 : i32, i32
  }
  func.func @transform_6(%arg0: i32) -> (i32, i32) {
    %c0_i32 = arith.constant 0 : i32
    %c0_i32_0 = arith.constant 0 : i32
    %c0_i32_1 = arith.constant 0 : i32
    return %c0_i32, %c0_i32_0 : i32, i32
  }
  func.func @transform_7(%arg0: i32) -> (i32, i32) {
    %c0_i32 = arith.constant 0 : i32
    %c0_i32_0 = arith.constant 0 : i32
    return %arg0, %c0_i32 : i32, i32
  }
}

</mosaic_0001>

<llo_original>
// kernel: encoder_forward.1
$region0: #{encoder_forward.1}
  #allocation0 [shape = 'u32[]', space=smem, size = 0x4, offset = 0x4, fixed_abs, tag = 'smem constant byte address 0x4 - core index']
  #allocation1 [shape = 'u32[144,128]{1,0:T(1,128)}', space=vmem, size = 0x12000, scoped, tag = 'internal scratch']
  %s0 = inlined_call_operand.hbm [shape: f32[16,64], index: 0, kind: input, shape index: {}]
  %s1 = inlined_call_operand.hbm [shape: f32[64,256], index: 1, kind: input, shape index: {}]
  %s2 = inlined_call_operand.vmem [shape: f32[1,256], index: 2, kind: input, shape index: {}]
  %s3 = inlined_call_operand.hbm [shape: f32[256,128], index: 3, kind: input, shape index: {}]
  %s4 = inlined_call_operand.vmem [shape: f32[1,128], index: 4, kind: input, shape index: {}]
  %s5 = inlined_call_operand.hbm [shape: f32[128,128], index: 5, kind: input, shape index: {}]
  %s6 = inlined_call_operand.vmem [shape: f32[1,128], index: 6, kind: input, shape index: {}]
  %s7 = inlined_call_operand.vmem [shape: f32[16,128], index: 7, kind: output, shape index: {}]
  %s8 = sld [smem:[#allocation0]]
  $region54: #{encoder_forward.1} parent=0
    _
  %s10 = ssub.s32 1, %s8
  %s11 = scalar_select 0, %s10, %s8
  $region1: #{encoder_forward.1} parent=0
    #allocation2 [shape = 'u8[8192]{0}', space=vmem, size = 0x2000, scoped, tag = 'input window, operand 0, single buffered']
    #allocation3 [shape = 's32[1]{0}', space=sflag, size = 0x4, scoped, tag = 'scoped memory for encoder_forward.1']
    #allocation4 [shape = 'u8[65536]{0}', space=vmem, size = 0x10000, scoped, tag = 'input window, operand 1, single buffered']
    #allocation5 [shape = 's32[1]{0}', space=sflag, size = 0x4, scoped, tag = 'scoped memory for encoder_forward.1']
    #allocation6 [shape = 'u8[131072]{0}', space=vmem, size = 0x20000, scoped, tag = 'input window, operand 3, single buffered']
    #allocation7 [shape = 'u8[65536]{0}', space=vmem, size = 0x10000, scoped, tag = 'input window, operand 5, single buffered']
    #allocation8 [shape = 's32[1]{0}', space=sflag, size = 0x4, scoped, tag = 'scoped memory for encoder_forward.1']
    %12 = vsyncpa [#allocation3], 0
    %13 = vsyncpa [#allocation5], 0
    %14 = vsyncpa [#allocation8], 0
    // Predicated region
    $region2: #{encoder_forward.1} parent=1 // pred_check
      _
    $region3: #{encoder_forward.1} parent=1 // pred_check_branch
      %16 = sbr.rel (0) target = $region5
    $region4: #{encoder_forward.1} parent=1 // pred_region
      %s18 = ssub.s32 256, 256
      %19 = vsyncadd [#allocation3], %s18
      %s20 = sshll.u32 [#allocation2], 4
      %s21 = int_to_ptr.vmem [resolvable:$true] %s20
      %26 = dma.hbm_to_vmem [thread:$0]  %s0, 256, %s21, [#allocation3], 128, 128, 8
    $region5: #{encoder_forward.1} parent=1 // pred_fallthru
      _
    // Predicated region
    $region6: #{encoder_forward.1} parent=1 // pred_check
      _
    $region7: #{encoder_forward.1} parent=1 // pred_check_branch
      %28 = sbr.rel (0) target = $region9
    $region8: #{encoder_forward.1} parent=1 // pred_region
      %s30 = ssub.s32 2048, 2048
      %31 = vsyncadd [#allocation5], %s30
      %s32 = sshll.u32 [#allocation4], 4
      %s33 = int_to_ptr.vmem [resolvable:$true] %s32
      %38 = dma.hbm_to_vmem [thread:$0]  %s1, 2048, %s33, [#allocation5], 256, 256, 16
    $region9: #{encoder_forward.1} parent=1 // pred_fallthru
      _
    // Predicated region
    $region10: #{encoder_forward.1} parent=1 // pred_check
      _
    $region11: #{encoder_forward.1} parent=1 // pred_check_branch
      %40 = sbr.rel (0) target = $region13
    $region12: #{encoder_forward.1} parent=1 // pred_region
      _
    $region13: #{encoder_forward.1} parent=1 // pred_fallthru
      _
    // Predicated region
    $region14: #{encoder_forward.1} parent=1 // pred_check
      _
    $region15: #{encoder_forward.1} parent=1 // pred_check_branch
      %42 = sbr.rel (0) target = $region17
    $region16: #{encoder_forward.1} parent=1 // pred_region
      %s44 = ssub.s32 4096, 4096
      %45 = vsyncadd [#allocation5], %s44
      %s46 = sshll.u32 [#allocation6], 4
      %s47 = int_to_ptr.vmem [resolvable:$true] %s46
      %52 = dma.hbm_to_vmem [thread:$0]  %s3, 4096, %s47, [#allocation5], 128, 128, 8
    $region17: #{encoder_forward.1} parent=1 // pred_fallthru
      _
    // Predicated region
    $region18: #{encoder_forward.1} parent=1 // pred_check
      _
    $region19: #{encoder_forward.1} parent=1 // pred_check_branch
      %54 = sbr.rel (0) target = $region21
    $region20: #{encoder_forward.1} parent=1 // pred_region
      _
    $region21: #{encoder_forward.1} parent=1 // pred_fallthru
      _
    // Predicated region
    $region22: #{encoder_forward.1} parent=1 // pred_check
      _
    $region23: #{encoder_forward.1} parent=1 // pred_check_branch
      %56 = sbr.rel (0) target = $region25
    $region24: #{encoder_forward.1} parent=1 // pred_region
      %s58 = ssub.s32 2048, 2048
      %59 = vsyncadd [#allocation8], %s58
      %s60 = sshll.u32 [#allocation7], 4
      %s61 = int_to_ptr.vmem [resolvable:$true] %s60
      %66 = dma.hbm_to_vmem [thread:$0]  %s5, 2048, %s61, [#allocation8], 128, 128, 8
    $region25: #{encoder_forward.1} parent=1 // pred_fallthru
      _
    // Predicated region
    $region26: #{encoder_forward.1} parent=1 // pred_check
      _
    $region27: #{encoder_forward.1} parent=1 // pred_check_branch
      %68 = sbr.rel (0) target = $region29
    $region28: #{encoder_forward.1} parent=1 // pred_region
      _
    $region29: #{encoder_forward.1} parent=1 // pred_fallthru
      _
    // Predicated region
    $region30: #{encoder_forward.1} parent=1 // pred_check
      _
    $region31: #{encoder_forward.1} parent=1 // pred_check_branch
      %70 = sbr.rel (0) target = $region33
    $region32: #{encoder_forward.1} parent=1 // pred_region
      %71 = dma.done [#allocation3], 256
    $region33: #{encoder_forward.1} parent=1 // pred_fallthru
      _
    // Predicated region
    $region34: #{encoder_forward.1} parent=1 // pred_check
      _
    $region35: #{encoder_forward.1} parent=1 // pred_check_branch
      %73 = sbr.rel (0) target = $region37
    $region36: #{encoder_forward.1} parent=1 // pred_region
      %74 = dma.done [#allocation5], 2048
    $region37: #{encoder_forward.1} parent=1 // pred_fallthru
      _
    // Predicated region
    $region38: #{encoder_forward.1} parent=1 // pred_check
      _
    $region39: #{encoder_forward.1} parent=1 // pred_check_branch
      %76 = sbr.rel (0) target = $region41
    $region40: #{encoder_forward.1} parent=1 // pred_region
      %77 = dma.done [#allocation5], 4096
    $region41: #{encoder_forward.1} parent=1 // pred_fallthru
      _
    // Predicated region
    $region42: #{encoder_forward.1} parent=1 // pred_check
      _
    $region43: #{encoder_forward.1} parent=1 // pred_check_branch
      %79 = sbr.rel (0) target = $region45
    $region44: #{encoder_forward.1} parent=1 // pred_region
      %80 = dma.done [#allocation8], 2048
    $region45: #{encoder_forward.1} parent=1 // pred_fallthru
      _
    %v81 = vld [vmem:[#allocation2] sm:$0xff]
    %v82 = vld [vmem:[#allocation2 + $0x8] sm:$0xff]
    %v83 = vld [vmem:[#allocation4] sm:$0xff]
    %v84 = vld [vmem:[#allocation4 + $0x8] sm:$0xff]
    %v85 = vld [vmem:[#allocation4 + $0x10] sm:$0xff]
    %v86 = vld [vmem:[#allocation4 + $0x18] sm:$0xff]
    %v87 = vld [vmem:[#allocation4 + $0x20] sm:$0xff]
    %v88 = vld [vmem:[#allocation4 + $0x28] sm:$0xff]
    %v89 = vld [vmem:[#allocation4 + $0x30] sm:$0xff]
    %v90 = vld [vmem:[#allocation4 + $0x38] sm:$0xff]
    %v91 = vld [vmem:[#allocation4 + $0x40] sm:$0xff]
    %v92 = vld [vmem:[#allocation4 + $0x48] sm:$0xff]
    %v93 = vld [vmem:[#allocation4 + $0x50] sm:$0xff]
    %v94 = vld [vmem:[#allocation4 + $0x58] sm:$0xff]
    %v95 = vld [vmem:[#allocation4 + $0x60] sm:$0xff]
    %v96 = vld [vmem:[#allocation4 + $0x68] sm:$0xff]
    %v97 = vld [vmem:[#allocation4 + $0x70] sm:$0xff]
    %v98 = vld [vmem:[#allocation4 + $0x78] sm:$0xff]
    %v99 = vld [vmem:[%s2] sm:$0x3]
    %v101 = vlaneseq
    %v102 = vshrl.u32 %v101, 7
    %v103 = vsub.s32 0, %v102
    %v104 = vrot.slane %v99, %v103
    %v105 = vlaneseq
    %v106 = vshrl.u32 %v105, 7
    %v107 = vsub.s32 1, %v106
    %v108 = vrot.slane %v99, %v107
    %vm111 = vcmask 523264
    %v113 = vsel %vm111, %v81, 0
    %v116 = vsel %vm111, %v82, 0
    %118 = vmatprep.subr.mxu0 0.0
    %119 = vmatpush1.msra.mxu0 0.0
    %120 = vmatprep.subr.mxu0 0.0
    %121 = vmatpush1.msra.mxu0 0.0
    %122 = vmatprep.subr.mxu0 0.0
    %123 = vmatpush1.msra.mxu0 0.0
    %124 = vmatprep.subr.mxu0 0.0
    %125 = vmatpush1.msra.mxu0 0.0
    %126 = vmatprep.subr.mxu0 0.0
    %127 = vmatpush1.msra.mxu0 0.0
    %128 = vmatprep.subr.mxu0 0.0
    %129 = vmatpush1.msra.mxu0 0.0
    %130 = vmatprep.subr.mxu0 0.0
    %131 = vmatpush1.msra.mxu0 0.0
    %132 = vmatprep.subr.mxu0 0.0
    %133 = vmatpush1.msra.mxu0 0.0
    %134 = vmatprep.subr.mxu0 %v98
    %135 = vmatpush1.msra.mxu0 %v97
    %136 = vmatprep.subr.mxu0 %v96
    %137 = vmatpush1.msra.mxu0 %v95
    %138 = vmatprep.subr.mxu0 %v94
    %139 = vmatpush1.msra.mxu0 %v93
    %140 = vmatprep.subr.mxu0 %v92
    %141 = vmatpush1.msra.mxu0 %v91
    %142 = vmatprep.subr.mxu0 %v90
    %143 = vmatpush1.msra.mxu0 %v89
    %144 = vmatprep.subr.mxu0 %v88
    %145 = vmatpush1.msra.mxu0 %v87
    %146 = vmatprep.subr.mxu0 %v86
    %147 = vmatpush1.msra.mxu0 %v85
    %148 = vmatprep.subr.mxu0 %v84
    %149 = vmatpush1.msra.mxu0 %v83
    %150 = vmatprep.subr.mxu0 0.0
    %151 = vmatpush2.msra.mxu0 0.0
    %152 = vmatprep.subr.mxu0 0.0
    %153 = vmatpush2.msra.mxu0 0.0
    %154 = vmatprep.subr.mxu0 0.0
    %155 = vmatpush2.msra.mxu0 0.0
    %156 = vmatprep.subr.mxu0 0.0
    %157 = vmatpush2.msra.mxu0 0.0
    %158 = vmatprep.subr.mxu0 0.0
    %159 = vmatpush2.msra.mxu0 0.0
    %160 = vmatprep.subr.mxu0 0.0
    %161 = vmatpush2.msra.mxu0 0.0
    %162 = vmatprep.subr.mxu0 0.0
    %163 = vmatpush2.msra.mxu0 0.0
    %164 = vmatprep.subr.mxu0 0.0
    %165 = vmatpush2.msra.mxu0 0.0
    %166 = vmatprep.subr.mxu0 0.0
    %167 = vmatpush2.msra.mxu0 0.0
    %168 = vmatprep.subr.mxu0 0.0
    %169 = vmatpush2.msra.mxu0 0.0
    %170 = vmatprep.subr.mxu0 0.0
    %171 = vmatpush2.msra.mxu0 0.0
    %172 = vmatprep.subr.mxu0 0.0
    %173 = vmatpush2.msra.mxu0 0.0
    %174 = vmatprep.subr.mxu0 0.0
    %175 = vmatpush2.msra.mxu0 0.0
    %176 = vmatprep.subr.mxu0 0.0
    %177 = vmatpush2.msra.mxu0 0.0
    %178 = vmatprep.subr.mxu0 0.0
    %179 = vmatpush2.msra.mxu0 0.0
    %180 = vmatprep.subr.mxu0 0.0
    %181 = vmatpush2.msra.mxu0 0.0
    %182 = vmatprep.mubr.f32.mxu0 0.0
    %183 = vmatmul.mubr.f32.gmra.mxu0 %v113
    %v184 = vpop.f32.mrf.mxu0
    %v185 = vadd.f32 %v104, %v184
    %v186 = vpop.f32.mrf.mxu0
    %v187 = vadd.f32 %v108, %v186
    %188 = vmatprep.mubr.f32.mxu0 0.0
    %189 = vmatmul.mubr.f32.gmra.mxu0 %v116
    %v190 = vpop.f32.mrf.mxu0
    %v191 = vadd.f32 %v104, %v190
    %v192 = vpop.f32.mrf.mxu0
    %v193 = vadd.f32 %v108, %v192
    %194 = vdwg.mxu0
    %v195 = vmax.f32 %v185, 0.0
    %v196 = vmax.f32 %v187, 0.0
    %v197 = vmax.f32 %v191, 0.0
    %v198 = vmax.f32 %v193, 0.0
    %v199 = vld [vmem:[#allocation6] sm:$0xff]
    %v200 = vld [vmem:[#allocation6 + $0x8] sm:$0xff]
    %v201 = vld [vmem:[#allocation6 + $0x10] sm:$0xff]
    %v202 = vld [vmem:[#allocation6 + $0x18] sm:$0xff]
    %v203 = vld [vmem:[#allocation6 + $0x20] sm:$0xff]
    %v204 = vld [vmem:[#allocation6 + $0x28] sm:$0xff]
    %v205 = vld [vmem:[#allocation6 + $0x30] sm:$0xff]
    %v206 = vld [vmem:[#allocation6 + $0x38] sm:$0xff]
    %v207 = vld [vmem:[#allocation6 + $0x40] sm:$0xff]
    %v208 = vld [vmem:[#allocation6 + $0x48] sm:$0xff]
    %v209 = vld [vmem:[#allocation6 + $0x50] sm:$0xff]
    %v210 = vld [vmem:[#allocation6 + $0x58] sm:$0xff]
    %v211 = vld [vmem:[#allocation6 + $0x60] sm:$0xff]
    %v212 = vld [vmem:[#allocation6 + $0x68] sm:$0xff]
    %v213 = vld [vmem:[#allocation6 + $0x70] sm:$0xff]
    %v214 = vld [vmem:[#allocation6 + $0x78] sm:$0xff]
    %v215 = vld [vmem:[#allocation6 + $0x80] sm:$0xff]
    %v216 = vld [vmem:[#allocation6 + $0x88] sm:$0xff]
    %v217 = vld [vmem:[#allocation6 + $0x90] sm:$0xff]
    %v218 = vld [vmem:[#allocation6 + $0x98] sm:$0xff]
    %v219 = vld [vmem:[#allocation6 + $0xa0] sm:$0xff]
    %v220 = vld [vmem:[#allocation6 + $0xa8] sm:$0xff]
    %v221 = vld [vmem:[#allocation6 + $0xb0] sm:$0xff]
    %v222 = vld [vmem:[#allocation6 + $0xb8] sm:$0xff]
    %v223 = vld [vmem:[#allocation6 + $0xc0] sm:$0xff]
    %v224 = vld [vmem:[#allocation6 + $0xc8] sm:$0xff]
    %v225 = vld [vmem:[#allocation6 + $0xd0] sm:$0xff]
    %v226 = vld [vmem:[#allocation6 + $0xd8] sm:$0xff]
    %v227 = vld [vmem:[#allocation6 + $0xe0] sm:$0xff]
    %v228 = vld [vmem:[#allocation6 + $0xe8] sm:$0xff]
    %v229 = vld [vmem:[#allocation6 + $0xf0] sm:$0xff]
    %v230 = vld [vmem:[#allocation6 + $0xf8] sm:$0xff]
    %v231 = vld [vmem:[%s4] sm:$0x1]
    %v233 = vlaneseq
    %v234 = vshrl.u32 %v233, 7
    %v235 = vsub.s32 0, %v234
    %v236 = vrot.slane %v231, %v235
    %238 = vmatprep.subr.mxu0 0.0
    %239 = vmatpush1.msra.mxu0 %v214
    %240 = vmatprep.subr.mxu0 0.0
    %241 = vmatpush1.msra.mxu0 %v213
    %242 = vmatprep.subr.mxu0 0.0
    %243 = vmatpush1.msra.mxu0 %v212
    %244 = vmatprep.subr.mxu0 0.0
    %245 = vmatpush1.msra.mxu0 %v211
    %246 = vmatprep.subr.mxu0 0.0
    %247 = vmatpush1.msra.mxu0 %v210
    %248 = vmatprep.subr.mxu0 0.0
    %249 = vmatpush1.msra.mxu0 %v209
    %250 = vmatprep.subr.mxu0 0.0
    %251 = vmatpush1.msra.mxu0 %v208
    %252 = vmatprep.subr.mxu0 0.0
    %253 = vmatpush1.msra.mxu0 %v207
    %254 = vmatprep.subr.mxu0 0.0
    %255 = vmatpush1.msra.mxu0 %v206
    %256 = vmatprep.subr.mxu0 0.0
    %257 = vmatpush1.msra.mxu0 %v205
    %258 = vmatprep.subr.mxu0 0.0
    %259 = vmatpush1.msra.mxu0 %v204
    %260 = vmatprep.subr.mxu0 0.0
    %261 = vmatpush1.msra.mxu0 %v203
    %262 = vmatprep.subr.mxu0 0.0
    %263 = vmatpush1.msra.mxu0 %v202
    %264 = vmatprep.subr.mxu0 0.0
    %265 = vmatpush1.msra.mxu0 %v201
    %266 = vmatprep.subr.mxu0 0.0
    %267 = vmatpush1.msra.mxu0 %v200
    %268 = vmatprep.subr.mxu0 0.0
    %269 = vmatpush1.msra.mxu0 %v199
    %270 = vmatprep.subr.mxu0 0.0
    %271 = vmatpush2.msra.mxu0 %v230
    %272 = vmatprep.subr.mxu0 0.0
    %273 = vmatpush2.msra.mxu0 %v229
    %274 = vmatprep.subr.mxu0 0.0
    %275 = vmatpush2.msra.mxu0 %v228
    %276 = vmatprep.subr.mxu0 0.0
    %277 = vmatpush2.msra.mxu0 %v227
    %278 = vmatprep.subr.mxu0 0.0
    %279 = vmatpush2.msra.mxu0 %v226
    %280 = vmatprep.subr.mxu0 0.0
    %281 = vmatpush2.msra.mxu0 %v225
    %282 = vmatprep.subr.mxu0 0.0
    %283 = vmatpush2.msra.mxu0 %v224
    %284 = vmatprep.subr.mxu0 0.0
    %285 = vmatpush2.msra.mxu0 %v223
    %286 = vmatprep.subr.mxu0 0.0
    %287 = vmatpush2.msra.mxu0 %v222
    %288 = vmatprep.subr.mxu0 0.0
    %289 = vmatpush2.msra.mxu0 %v221
    %290 = vmatprep.subr.mxu0 0.0
    %291 = vmatpush2.msra.mxu0 %v220
    %292 = vmatprep.subr.mxu0 0.0
    %293 = vmatpush2.msra.mxu0 %v219
    %294 = vmatprep.subr.mxu0 0.0
    %295 = vmatpush2.msra.mxu0 %v218
    %296 = vmatprep.subr.mxu0 0.0
    %297 = vmatpush2.msra.mxu0 %v217
    %298 = vmatprep.subr.mxu0 0.0
    %299 = vmatpush2.msra.mxu0 %v216
    %300 = vmatprep.subr.mxu0 0.0
    %301 = vmatpush2.msra.mxu0 %v215
    %302 = vmatprep.mubr.f32.mxu0 %v196
    %303 = vmatmul.mubr.f32.gmra.mxu0 %v195
    %v304 = vpop.f32.mrf.mxu0
    %v305 = vadd.f32 %v236, %v304
    %v306 = vpop.f32.mrf.mxu0
    %307 = vmatprep.mubr.f32.mxu0 %v198
    %308 = vmatmul.mubr.f32.gmra.mxu0 %v197
    %v309 = vpop.f32.mrf.mxu0
    %v310 = vadd.f32 %v236, %v309
    %v311 = vpop.f32.mrf.mxu0
    %312 = vdwg.mxu0
    %v313 = vmax.f32 %v305, 0.0
    %v314 = vmax.f32 %v310, 0.0
    %v315 = vld [vmem:[#allocation7] sm:$0xff]
    %v316 = vld [vmem:[#allocation7 + $0x8] sm:$0xff]
    %v317 = vld [vmem:[#allocation7 + $0x10] sm:$0xff]
    %v318 = vld [vmem:[#allocation7 + $0x18] sm:$0xff]
    %v319 = vld [vmem:[#allocation7 + $0x20] sm:$0xff]
    %v320 = vld [vmem:[#allocation7 + $0x28] sm:$0xff]
    %v321 = vld [vmem:[#allocation7 + $0x30] sm:$0xff]
    %v322 = vld [vmem:[#allocation7 + $0x38] sm:$0xff]
    %v323 = vld [vmem:[#allocation7 + $0x40] sm:$0xff]
    %v324 = vld [vmem:[#allocation7 + $0x48] sm:$0xff]
    %v325 = vld [vmem:[#allocation7 + $0x50] sm:$0xff]
    %v326 = vld [vmem:[#allocation7 + $0x58] sm:$0xff]
    %v327 = vld [vmem:[#allocation7 + $0x60] sm:$0xff]
    %v328 = vld [vmem:[#allocation7 + $0x68] sm:$0xff]
    %v329 = vld [vmem:[#allocation7 + $0x70] sm:$0xff]
    %v330 = vld [vmem:[#allocation7 + $0x78] sm:$0xff]
    %v331 = vld [vmem:[%s6] sm:$0x1]
    %v333 = vlaneseq
    %v334 = vshrl.u32 %v333, 7
    %v335 = vsub.s32 0, %v334
    %v336 = vrot.slane %v331, %v335
    %338 = vmatprep.subr.mxu0 0.0
    %339 = vmatpush1.msra.mxu0 %v330
    %340 = vmatprep.subr.mxu0 0.0
    %341 = vmatpush1.msra.mxu0 %v329
    %342 = vmatprep.subr.mxu0 0.0
    %343 = vmatpush1.msra.mxu0 %v328
    %344 = vmatprep.subr.mxu0 0.0
    %345 = vmatpush1.msra.mxu0 %v327
    %346 = vmatprep.subr.mxu0 0.0
    %347 = vmatpush1.msra.mxu0 %v326
    %348 = vmatprep.subr.mxu0 0.0
    %349 = vmatpush1.msra.mxu0 %v325
    %350 = vmatprep.subr.mxu0 0.0
    %351 = vmatpush1.msra.mxu0 %v324
    %352 = vmatprep.subr.mxu0 0.0
    %353 = vmatpush1.msra.mxu0 %v323
    %354 = vmatprep.subr.mxu0 0.0
    %355 = vmatpush1.msra.mxu0 %v322
    %356 = vmatprep.subr.mxu0 0.0
    %357 = vmatpush1.msra.mxu0 %v321
    %358 = vmatprep.subr.mxu0 0.0
    %359 = vmatpush1.msra.mxu0 %v320
    %360 = vmatprep.subr.mxu0 0.0
    %361 = vmatpush1.msra.mxu0 %v319
    %362 = vmatprep.subr.mxu0 0.0
    %363 = vmatpush1.msra.mxu0 %v318
    %364 = vmatprep.subr.mxu0 0.0
    %365 = vmatpush1.msra.mxu0 %v317
    %366 = vmatprep.subr.mxu0 0.0
    %367 = vmatpush1.msra.mxu0 %v316
    %368 = vmatprep.subr.mxu0 0.0
    %369 = vmatpush1.msra.mxu0 %v315
    %370 = vmatprep.subr.mxu0 0.0
    %371 = vmatpush2.msra.mxu0 0.0
    %372 = vmatprep.subr.mxu0 0.0
    %373 = vmatpush2.msra.mxu0 0.0
    %374 = vmatprep.subr.mxu0 0.0
    %375 = vmatpush2.msra.mxu0 0.0
    %376 = vmatprep.subr.mxu0 0.0
    %377 = vmatpush2.msra.mxu0 0.0
    %378 = vmatprep.subr.mxu0 0.0
    %379 = vmatpush2.msra.mxu0 0.0
    %380 = vmatprep.subr.mxu0 0.0
    %381 = vmatpush2.msra.mxu0 0.0
    %382 = vmatprep.subr.mxu0 0.0
    %383 = vmatpush2.msra.mxu0 0.0
    %384 = vmatprep.subr.mxu0 0.0
    %385 = vmatpush2.msra.mxu0 0.0
    %386 = vmatprep.subr.mxu0 0.0
    %387 = vmatpush2.msra.mxu0 0.0
    %388 = vmatprep.subr.mxu0 0.0
    %389 = vmatpush2.msra.mxu0 0.0
    %390 = vmatprep.subr.mxu0 0.0
    %391 = vmatpush2.msra.mxu0 0.0
    %392 = vmatprep.subr.mxu0 0.0
    %393 = vmatpush2.msra.mxu0 0.0
    %394 = vmatprep.subr.mxu0 0.0
    %395 = vmatpush2.msra.mxu0 0.0
    %396 = vmatprep.subr.mxu0 0.0
    %397 = vmatpush2.msra.mxu0 0.0
    %398 = vmatprep.subr.mxu0 0.0
    %399 = vmatpush2.msra.mxu0 0.0
    %400 = vmatprep.subr.mxu0 0.0
    %401 = vmatpush2.msra.mxu0 0.0
    %402 = vmatprep.mubr.f32.mxu0 0.0
    %403 = vmatmul.mubr.f32.gmra.mxu0 %v313
    %v404 = vpop.f32.mrf.mxu0
    %v405 = vadd.f32 %v336, %v404
    %v406 = vpop.f32.mrf.mxu0
    %407 = vmatprep.mubr.f32.mxu0 0.0
    %408 = vmatmul.mubr.f32.gmra.mxu0 %v314
    %v409 = vpop.f32.mrf.mxu0
    %v410 = vadd.f32 %v336, %v409
    %v411 = vpop.f32.mrf.mxu0
    %412 = vdwg.mxu0
    %413 = vst [vmem:[%s7] sm:$0xff] %v405
    %414 = vst [vmem:[%s7 + $0x8] sm:$0xff] %v410
    // Predicated region
    $region46: #{encoder_forward.1} parent=1 // pred_check
      _
    $region47: #{encoder_forward.1} parent=1 // pred_check_branch
      %416 = sbr.rel (0) target = $region49
    $region48: #{encoder_forward.1} parent=1 // pred_region
      _
    $region49: #{encoder_forward.1} parent=1 // pred_fallthru
      _
    // Predicated region
    $region50: #{encoder_forward.1} parent=1 // pred_check
      _
    $region51: #{encoder_forward.1} parent=1 // pred_check_branch
      %418 = sbr.rel (0) target = $region53
    $region52: #{encoder_forward.1} parent=1 // pred_region
      _
    $region53: #{encoder_forward.1} parent=1 // pred_fallthru
      _
    %419 = vsyncpa [#allocation3], 1
    %420 = vsyncpa [#allocation5], 1
    %421 = vsyncpa [#allocation8], 1

</llo_original>
